<compile_context>
chip_gen: v7x
topology: tpu7x:2x2x1
jax: 0.10.0
libtpu: 0.0.40
codegen_flags: <defaults>
</compile_context>

<pallas_src>
import math
import functools

import jax
import jax.numpy as jnp
from jax import lax
from jax.experimental import pallas as pl
from jax.experimental.pallas import tpu as pltpu

# module hyper-parameters (HHEdgeCons defaults)
RECONS_ERROR_LAMBDA = 0.1
L2_LAMBDA = 0.2
RECONS_LAMBDA = 0.01


def _round_up(x, m):
    return ((x + m - 1) // m) * m


# ----------------------------- theta kernel ---------------------------------
def _theta_kernel(x_ref, w_ref, b_ref, o_ref):
    o_ref[...] = (jnp.dot(x_ref[...], w_ref[...],
                          preferred_element_type=jnp.float32) + b_ref[...])


# ------------------------------ main kernel ---------------------------------
def _hhgnn_main_kernel(T, F, H, HP, BN,
                       feat_k_ref,   # (BK, F)     theta features, contraction chunk
                       feat_i_ref,   # (BN, F)     theta features, node tile
                       lm_ref,       # (T, BN, BK) linear*mask chunk (type-major)
                       oh_ref,       # (BN, T)     node-type one-hot
                       pnode_ref,    # (F, T*F)    node proj (wide, pre-transposed)
                       prec_ref,     # (F, T*T*F)  recon proj (wide, pre-transposed)
                       pedge_ref,    # (T, F, T*F) edge proj (wide, pre-transposed)
                       g_ref,        # (F, HP)     head grouping matrix
                       gt_ref,       # (HP, F)     its transpose
                       nrep_ref,     # out (BN, F) node representation tile
                       loss_ref,     # out (1, 8, 128) lane-dense loss partials
                       acc_recon,    # scratch (T, BN, F)
                       acc_rs,       # scratch (T, BN, 1)
                       acc_sq):      # scratch (T, BN, 1)
    f32 = jnp.float32
    k = pl.program_id(1)
    nk = pl.num_programs(1)
    scale = 1.0 / math.sqrt(F // H)

    @pl.when(k == 0)
    def _init():
        acc_recon[...] = jnp.zeros_like(acc_recon)
        acc_rs[...] = jnp.zeros_like(acc_rs)
        acc_sq[...] = jnp.zeros_like(acc_sq)

    # ---- streamed contraction over the hyper-edge-member (node) axis ----
    feat_k = feat_k_ref[...]                                 # (BK, F)
    for j in range(T):                                       # static unroll, T small
        lm = lm_ref[j]                                       # (BN, BK)
        ls = jnp.where(lm > 0, lm, 0.0)                      # masked_fill(~(>0), 0)
        acc_recon[j, :, :] += jnp.dot(ls, feat_k, preferred_element_type=f32)
        acc_rs[j, :, :] += jnp.sum(ls, axis=-1, keepdims=True)   # XLU, keeps MXU free
        acc_sq[j, :, :] += jnp.sum(ls * ls, axis=-1, keepdims=True)

    # ---- finalize on the last contraction step ----
    @pl.when(k == nk - 1)
    def _finalize():
        feat_tile = feat_i_ref[...]                          # (BN, F)
        oh = oh_ref[...]                                     # (BN, T)

        # all per-type projections as wide MXU matmuls; one-hot select afterwards
        node_all = jnp.dot(feat_tile, pnode_ref[...], preferred_element_type=f32)  # (BN,T*F)
        inp_all = jnp.dot(feat_tile, prec_ref[...], preferred_element_type=f32)    # (BN,T*T*F)
        node_m = jnp.zeros((BN, F), f32)
        for t in range(T):
            node_m = node_m + oh[:, t:t + 1] * node_all[:, t * F:(t + 1) * F]

        hlane = lax.broadcasted_iota(jnp.int32, (1, HP), 1)
        head_valid = hlane < H

        l1 = jnp.zeros((1, 1), f32)
        l2 = jnp.zeros((1, 1), f32)
        err = jnp.zeros((1, 1), f32)
        nrep = jnp.zeros((BN, F), f32)

        for j in range(T):
            recon = acc_recon[j]                             # (BN, F)
            rs = acc_rs[j]                                   # (BN, 1)
            sq = acc_sq[j]                                   # (BN, 1)

            # L1 of clamped matrix: ls >= 0 so |ls| row-sum == row_sum
            l1 = l1 + jnp.sum(rs, keepdims=True)
            l2 = l2 + jnp.sum(jnp.sqrt(sq), keepdims=True)

            # HHEdgeMP: (recon + feature) / (deg + 1)
            edge_fea = (recon + feat_tile) / (rs + 1.0)      # (BN, F)

            # per (node-type, edge-type) projections: one wide matmul, one-hot select
            edge_all = jnp.dot(edge_fea, pedge_ref[j], preferred_element_type=f32)  # (BN,T*F)
            inp_proj = jnp.zeros((BN, F), f32)
            edge_m = jnp.zeros((BN, F), f32)
            for t in range(T):
                sel = oh[:, t:t + 1]
                p = t * T + j
                inp_proj = inp_proj + sel * inp_all[:, p * F:(p + 1) * F]
                edge_m = edge_m + sel * edge_all[:, t * F:(t + 1) * F]

            diff = inp_proj - recon
            err = err + jnp.sum(
                jnp.sqrt(jnp.sum(diff * diff, axis=-1, keepdims=True)), keepdims=True)

            # MultiheadWeight: per-head score + softmax over heads (padded lanes masked)
            prod = node_m * edge_m * scale                                       # (BN, F)
            scores = jnp.dot(prod, g_ref[...], preferred_element_type=f32)       # (BN, HP)
            scores = jnp.where(head_valid, scores, -1e30)
            smax = jnp.max(scores, axis=-1, keepdims=True)
            es = jnp.exp(scores - smax)
            all_r = es / jnp.sum(es, axis=-1, keepdims=True)                      # (BN, HP)
            all_r_exp = jnp.dot(all_r, gt_ref[...], preferred_element_type=f32)  # (BN, F)

            # HHNodeMP: ReLU(weight * edge_fea), summed over edge types.
            # TODO(synk): nn.Dropout(0.3) treated as identity (eval-mode forward).
            nrep = nrep + jnp.maximum(all_r_exp * edge_fea, 0.0)

        nrep_ref[...] = nrep
        lane = lax.broadcasted_iota(jnp.int32, (1, 8, 128), 2)
        loss_ref[...] = (jnp.where(lane == 0, l1, 0.0)
                         + jnp.where(lane == 1, l2, 0.0)
                         + jnp.where(lane == 2, err, 0.0))


# ---------------------------- predictor kernel ------------------------------
def _pred_kernel(x_ref, w_ref, b_ref, o_ref):
    f32 = jnp.float32
    logits = jnp.dot(x_ref[...], w_ref[...], preferred_element_type=f32) + b_ref[...]
    sig = 1.0 / (1.0 + jnp.exp(-logits))
    m = jnp.max(sig, axis=-1, keepdims=True)
    e = jnp.exp(sig - m)
    # TODO(synk): predictor Dropout(0.1) treated as identity (eval-mode forward).
    o_ref[...] = e / jnp.sum(e, axis=-1, keepdims=True)


# -------------------------------- wrapper -----------------------------------
def hhgnn_forward(feature, node_idx, params, mask, node_multi_mask, data_stat):
    N = data_stat['num_node']
    T = data_stat['num_type']
    F = data_stat['num_fea']
    H = data_stat['num_head']
    C = data_stat['num_cat']
    f32 = jnp.float32
    HP = _round_up(max(H, 1), 128)          # lane-dense head axis

    # node-axis tile (BN) / contraction tile (BK); pad N so both divide evenly
    if N <= 256:
        NP = _round_up(N, 8)
        BN = BK = NP                         # single tile each way
    else:
        BN, BK = 256, 512
        NP = _round_up(N, 512)               # even #node-tiles (v7x 2-TC sharding)
    NI, NK = NP // BN, NP // BK

    # ---- glue: casts / transposes / padding / one-hot / projection packing ----
    theta_wT = params['theta_w'].T.astype(f32)                               # (F, F)
    theta_b = params['theta_b'].reshape(1, F).astype(f32)

    # exact semantics: linear * (float) mask computed once, streamed as one array
    lm4 = jnp.broadcast_to(params['linear'].astype(f32) * mask.astype(f32),
                           (N, T, 1, N))
    lm_t = lm4.reshape(N, T, N).transpose(1, 0, 2)                           # (T, N, N)
    lm_p = jnp.pad(lm_t, ((0, 0), (0, NP - N), (0, NP - N)))                 # zero pad

    oh = (node_multi_mask[:, None] == jnp.arange(T)[None, :]).astype(f32)    # (N, T)
    oh_p = jnp.pad(oh, ((0, NP - N), (0, 0)))
    feat_p = jnp.pad(feature.astype(f32), ((0, NP - N), (0, 0)))             # (NP, F)

    # deduplicated projections, pre-transposed and packed as wide matmul RHS
    prec_T = jnp.swapaxes(params['recon_original_proj'].astype(f32), 1, 2)   # (T*T,F,F)
    pnode_T = jnp.swapaxes(params['multi_head_node_proj'].astype(f32), 1, 2) # (T,F,F)
    pedge_T = jnp.swapaxes(params['multi_head_edge_proj'].astype(f32), 1, 2) # (T*T,F,F)
    pnode_wide = jnp.concatenate([pnode_T[t] for t in range(T)], axis=-1)    # (F, T*F)
    prec_wide = jnp.concatenate([prec_T[p] for p in range(T * T)], axis=-1)  # (F, T*T*F)
    pedge_wide = jnp.stack(
        [jnp.concatenate([pedge_T[t * T + j] for t in range(T)], axis=-1)
         for j in range(T)], axis=0)                                         # (T, F, T*F)

    Fh = F // H
    G = ((jnp.arange(F)[:, None] // Fh) == jnp.arange(HP)[None, :]).astype(f32)  # (F, HP)
    GT = G.T                                                                 # (HP, F)
    pred_wT = params['pred_w'].T.astype(f32)                                 # (F, C)
    pred_b = params['pred_b'].reshape(1, C).astype(f32)

    # ---- pass 1: theta linear layer over all (padded) nodes ----
    feat_theta = pl.pallas_call(
        _theta_kernel,
        out_shape=jax.ShapeDtypeStruct((NP, F), f32),
        grid=(NI,),
        in_specs=[pl.BlockSpec((BN, F), lambda i: (i, 0)),
                  pl.BlockSpec((F, F), lambda i: (0, 0)),
                  pl.BlockSpec((1, F), lambda i: (0, 0))],
        out_specs=pl.BlockSpec((BN, F), lambda i: (i, 0)),
        compiler_params=pltpu.CompilerParams(dimension_semantics=("parallel",)),
    )(feat_p, theta_wT, theta_b)

    # ---- pass 2: fused EdgeCons + EdgeMP + MultiheadWeight + NodeMP ----
    flops = int(2 * T * NP * NP * F                       # recon contraction
                + 2 * NP * F * F * (T + T * T)            # node + recon projections
                + 2 * T * NP * F * (T * F)                # edge projections
                + 4 * T * NP * F * HP                     # attention matmuls
                + 10 * T * NP * NP + 20 * T * NP * F)     # elementwise
    transc = int(T * NP * (HP + 3))
    bytes_acc = int(4 * T * NP * NP + 4 * NP * F * (NI + NK + 1)
                    + 4 * F * F * (2 * T * T + T) + 8 * F * HP + 4 * NI * 8 * 128)

    kernel = functools.partial(_hhgnn_main_kernel, T, F, H, HP, BN)
    node_rep_p, loss_parts = pl.pallas_call(
        kernel,
        out_shape=(jax.ShapeDtypeStruct((NP, F), f32),
                   jax.ShapeDtypeStruct((NI, 8, 128), f32)),
        grid=(NI, NK),
        in_specs=[
            pl.BlockSpec((BK, F), lambda i, k: (k, 0)),            # feat, k chunk
            pl.BlockSpec((BN, F), lambda i, k: (i, 0)),            # feat, node tile
            pl.BlockSpec((T, BN, BK), lambda i, k: (0, i, k)),     # linear*mask chunk
            pl.BlockSpec((BN, T), lambda i, k: (i, 0)),            # one-hot types
            pl.BlockSpec((F, T * F), lambda i, k: (0, 0)),         # node proj (wide)
            pl.BlockSpec((F, T * T * F), lambda i, k: (0, 0)),     # recon proj (wide)
            pl.BlockSpec((T, F, T * F), lambda i, k: (0, 0, 0)),   # edge proj (wide)
            pl.BlockSpec((F, HP), lambda i, k: (0, 0)),            # G
            pl.BlockSpec((HP, F), lambda i, k: (0, 0)),            # G^T
        ],
        out_specs=(pl.BlockSpec((BN, F), lambda i, k: (i, 0)),
                   pl.BlockSpec((1, 8, 128), lambda i, k: (i, 0, 0))),
        scratch_shapes=[pltpu.VMEM((T, BN, F), f32),
                        pltpu.VMEM((T, BN, 1), f32),
                        pltpu.VMEM((T, BN, 1), f32)],
        compiler_params=pltpu.CompilerParams(
            dimension_semantics=("parallel", "arbitrary"),
            vmem_limit_bytes=48 * 1024 * 1024),
        cost_estimate=pl.CostEstimate(flops=flops, transcendentals=transc,
                                      bytes_accessed=bytes_acc),
    )(feat_theta, feat_theta, lm_p, oh_p, pnode_wide, prec_wide, pedge_wide, G, GT)

    node_rep = node_rep_p[:N]
    l1 = jnp.sum(loss_parts[:, 0, 0])
    l2 = jnp.sum(loss_parts[:, 0, 1])
    err = jnp.sum(loss_parts[:, 0, 2])
    recon_loss = RECONS_ERROR_LAMBDA * (RECONS_LAMBDA * err + L2_LAMBDA * l2 + l1)

    # ---- pass 3: predictor only on the gathered node_idx rows ----
    node_emb = node_rep[node_idx]                       # row gather: wrapper glue
    K = node_emb.shape[0]
    vm = pl.BlockSpec(memory_space=pltpu.MemorySpace.VMEM)
    predict = pl.pallas_call(
        _pred_kernel,
        out_shape=jax.ShapeDtypeStruct((K, C), f32),
        in_specs=[vm, vm, vm],
        out_specs=vm,
    )(node_emb, pred_wT, pred_b)

    return predict, recon_loss, node_rep


if __name__ == "__main__":
    N, T, F, H, C = 8, 4, 32, 4, 4
    data_stat = dict(num_node=N, num_type=T, num_fea=F, num_head=H, num_cat=C)

    key = jax.random.PRNGKey(0)
    ks = jax.random.split(key, 10)

    def xavier(k, shape, fan_in, fan_out):
        a = math.sqrt(6.0 / (fan_in + fan_out))
        return jax.random.uniform(k, shape, jnp.float32, -a, a)

    params = {
        'theta_w': xavier(ks[0], (F, F), F, F),
        'theta_b': jnp.zeros((F,), jnp.float32),
        'linear': xavier(ks[1], (N, T, 1, N), N, 1),
        'recon_original_proj': xavier(ks[2], (T * T, F, F), F, F),
        'multi_head_node_proj': xavier(ks[3], (T, F, F), F, F),
        'multi_head_edge_proj': xavier(ks[4], (T * T, F, F), F, F),
        'pred_w': xavier(ks[5], (C, F), F, C),
        'pred_b': jnp.zeros((C,), jnp.float32),
    }

    feature = jax.random.normal(ks[6], (N, F), jnp.float32)
    mask = (jax.random.uniform(ks[7], (N, T, 1, N)) > 0.5).astype(jnp.float32)
    node_multi_mask = jax.random.randint(ks[8], (N,), 0, T)
    node_idx = jnp.array([0, 2, 5], dtype=jnp.int32)

    predict, recon_loss, node_rep = hhgnn_forward(
        feature, node_idx, params, mask, node_multi_mask, data_stat)
    jax.block_until_ready((predict, recon_loss, node_rep))
    print("KERNEL_OK")
</pallas_src>

<mosaic_0001>
module attributes {stable_mosaic.version = 11 : i64} {
  func.func @_theta_kernel(%arg0: i32, %arg1: memref<8x32xf32, #tpu.memory_space<vmem>>, %arg2: memref<32x32xf32, #tpu.memory_space<vmem>>, %arg3: memref<1x32xf32, #tpu.memory_space<vmem>>, %arg4: memref<8x32xf32, #tpu.memory_space<vmem>>) attributes {dimension_semantics = [#tpu.dimension_semantics<parallel>], iteration_bounds = array<i64: 1>, scalar_prefetch = 0 : i64, scratch_operands = 0 : i64, tpu.core_type = #tpu.core_type<tc>, window_params = [{transform_indices = @transform_0, window_bounds = array<i64: 8, 32>}, {pipeline_mode = #tpu.pipeline_mode<synchronous>, transform_indices = @transform_1, window_bounds = array<i64: 32, 32>}, {pipeline_mode = #tpu.pipeline_mode<synchronous>, transform_indices = @transform_2, window_bounds = array<i64: 1, 32>}, {transform_indices = @transform_3, window_bounds = array<i64: 8, 32>}]} {
    %c0 = arith.constant 0 : index
    %c0_0 = arith.constant 0 : index
    %0 = vector.load %arg1[%c0, %c0_0] : memref<8x32xf32, #tpu.memory_space<vmem>>, vector<8x32xf32>
    %c0_1 = arith.constant 0 : index
    %c0_2 = arith.constant 0 : index
    %1 = vector.load %arg2[%c0_1, %c0_2] : memref<32x32xf32, #tpu.memory_space<vmem>>, vector<32x32xf32>
    %cst = arith.constant dense<0.000000e+00> : vector<8x32xf32>
    %2 = tpu.matmul %0, %1, %cst {dimension_numbers = #tpu.dot_dimension_numbers<[1], [0], [0], [1], [0, 0, 1, 1], [], []>} : vector<8x32xf32>, vector<32x32xf32>, vector<8x32xf32> -> vector<8x32xf32>
    %c0_3 = arith.constant 0 : index
    %c0_4 = arith.constant 0 : index
    %3 = vector.load %arg3[%c0_3, %c0_4] : memref<1x32xf32, #tpu.memory_space<vmem>>, vector<1x32xf32>
    %4 = vector.broadcast %3 : vector<1x32xf32> to vector<8x32xf32>
    %5 = arith.addf %2, %4 : vector<8x32xf32>
    %c0_5 = arith.constant 0 : index
    %c0_6 = arith.constant 0 : index
    %6 = vector.load %arg4[%c0_5, %c0_6] : memref<8x32xf32, #tpu.memory_space<vmem>>, vector<8x32xf32>
    tpu.vector_store %arg4[%c0_5, %c0_6], %5 {strides = array<i32>} : memref<8x32xf32, #tpu.memory_space<vmem>>, vector<8x32xf32>,
    return
  }
  func.func @transform_0(%arg0: i32) -> (i32, i32) {
    %c0_i32 = arith.constant 0 : i32
    %c0_i32_0 = arith.constant 0 : i32
    return %arg0, %c0_i32 : i32, i32
  }
  func.func @transform_1(%arg0: i32) -> (i32, i32) {
    %c0_i32 = arith.constant 0 : i32
    %c0_i32_0 = arith.constant 0 : i32
    %c0_i32_1 = arith.constant 0 : i32
    return %c0_i32, %c0_i32_0 : i32, i32
  }
  func.func @transform_2(%arg0: i32) -> (i32, i32) {
    %c0_i32 = arith.constant 0 : i32
    %c0_i32_0 = arith.constant 0 : i32
    %c0_i32_1 = arith.constant 0 : i32
    return %c0_i32, %c0_i32_0 : i32, i32
  }
  func.func @transform_3(%arg0: i32) -> (i32, i32) {
    %c0_i32 = arith.constant 0 : i32
    %c0_i32_0 = arith.constant 0 : i32
    return %arg0, %c0_i32 : i32, i32
  }
}

</mosaic_0001>

<llo_original>
// kernel: tpu_custom_call.1
$region0: #{tpu_custom_call.1}
  #allocation0 [shape = 'u32[]', space=smem, size = 0x4, offset = 0x4, fixed_abs, tag = 'smem constant byte address 0x4 - core index']
  #allocation1 [shape = 'u32[144,128]{1,0:T(1,128)}', space=vmem, size = 0x12000, scoped, tag = 'internal scratch']
  %s0 = inlined_call_operand.hbm [shape: f32[8,32], index: 0, kind: input, shape index: {}]
  %s1 = inlined_call_operand.hbm [shape: f32[32,32], index: 1, kind: input, shape index: {}]
  %s2 = inlined_call_operand.vmem [shape: f32[1,32], index: 2, kind: input, shape index: {}]
  %s3 = inlined_call_operand.hbm [shape: f32[8,32], index: 3, kind: output, shape index: {}]
  %s4 = sld [smem:[#allocation0]]
  $region30: #{tpu_custom_call.1} parent=0
    _
  %s6 = ssub.s32 1, %s4
  %s7 = scalar_select 0, %s6, %s4
  $region1: #{tpu_custom_call.1} parent=0
    #allocation2 [shape = 'u8[4096]{0}', space=vmem, size = 0x1000, scoped, tag = 'input window, operand 0, single buffered']
    #allocation3 [shape = 's32[1]{0}', space=sflag, size = 0x4, scoped, tag = 'scoped memory for tpu_custom_call.1']
    #allocation4 [shape = 's32[1]{0}', space=sflag, size = 0x4, scoped, tag = 'scoped memory for tpu_custom_call.1']
    #allocation5 [shape = 'u8[16384]{0}', space=vmem, size = 0x4000, scoped, tag = 'input window, operand 1, single buffered']
    #allocation6 [shape = 's32[1]{0}', space=sflag, size = 0x4, scoped, tag = 'scoped memory for tpu_custom_call.1']
    #allocation7 [shape = 'u8[4096]{0}', space=vmem, size = 0x1000, scoped, tag = 'output window, operand 0, single buffered']
    %8 = vsyncpa [#allocation3], 0
    %9 = vsyncpa [#allocation6], 0
    %10 = vsyncpa [#allocation4], 0
    // Predicated region
    $region2: #{tpu_custom_call.1} parent=1 // pred_check
      _
    $region3: #{tpu_custom_call.1} parent=1 // pred_check_branch
      %12 = sbr.rel (0) target = $region5
    $region4: #{tpu_custom_call.1} parent=1 // pred_region
      %s14 = ssub.s32 128, 128
      %15 = vsyncadd [#allocation3], %s14
      %s17 = sshll.u32 [#allocation2], 4
      %s18 = int_to_ptr.vmem [resolvable:$true] %s17
      %20 = dma.hbm_to_vmem [thread:$0]  %s0, 128, %s18, [#allocation3]
    $region5: #{tpu_custom_call.1} parent=1 // pred_fallthru
      _
    // Predicated region
    $region6: #{tpu_custom_call.1} parent=1 // pred_check
      _
    $region7: #{tpu_custom_call.1} parent=1 // pred_check_branch
      %22 = sbr.rel (0) target = $region9
    $region8: #{tpu_custom_call.1} parent=1 // pred_region
      %s24 = ssub.s32 512, 512
      %25 = vsyncadd [#allocation6], %s24
      %s26 = sshll.u32 [#allocation5], 4
      %s27 = int_to_ptr.vmem [resolvable:$true] %s26
      %32 = dma.hbm_to_vmem [thread:$0]  %s1, 512, %s27, [#allocation6], 128, 128, 8
    $region9: #{tpu_custom_call.1} parent=1 // pred_fallthru
      _
    // Predicated region
    $region10: #{tpu_custom_call.1} parent=1 // pred_check
      _
    $region11: #{tpu_custom_call.1} parent=1 // pred_check_branch
      %34 = sbr.rel (0) target = $region13
    $region12: #{tpu_custom_call.1} parent=1 // pred_region
      _
    $region13: #{tpu_custom_call.1} parent=1 // pred_fallthru
      _
    // Predicated region
    $region14: #{tpu_custom_call.1} parent=1 // pred_check
      _
    $region15: #{tpu_custom_call.1} parent=1 // pred_check_branch
      %36 = sbr.rel (0) target = $region17
    $region16: #{tpu_custom_call.1} parent=1 // pred_region
      %37 = dma.done [#allocation3], 128
    $region17: #{tpu_custom_call.1} parent=1 // pred_fallthru
      _
    // Predicated region
    $region18: #{tpu_custom_call.1} parent=1 // pred_check
      _
    $region19: #{tpu_custom_call.1} parent=1 // pred_check_branch
      %39 = sbr.rel (0) target = $region21
    $region20: #{tpu_custom_call.1} parent=1 // pred_region
      %40 = dma.done [#allocation6], 512
    $region21: #{tpu_custom_call.1} parent=1 // pred_fallthru
      _
    %v41 = vld [vmem:[#allocation2] sm:$0xff]
    %v42 = vld [vmem:[#allocation5] sm:$0xff]
    %v43 = vld [vmem:[#allocation5 + $0x8] sm:$0xff]
    %v44 = vld [vmem:[#allocation5 + $0x10] sm:$0xff]
    %v45 = vld [vmem:[#allocation5 + $0x18] sm:$0xff]
    %v46 = vld [vmem:[%s2] sm:$0x1]
    %v48 = vlaneseq
    %v49 = vshrl.u32 %v48, 7
    %v50 = vsub.s32 0, %v49
    %v51 = vrot.slane %v46, %v50
    %vm53 = vcmask 261120
    %v55 = vsel %vm53, %v41, 0
    %57 = vmatprep.subr.mxu0 0.0
    %58 = vmatpush1.msra.mxu0 %v42
    %59 = vmatprep.subr.mxu0 0.0
    %60 = vmatpush1.msra.mxu0 %v43
    %61 = vmatprep.subr.mxu0 0.0
    %62 = vmatpush1.msra.mxu0 %v44
    %63 = vmatprep.subr.mxu0 0.0
    %64 = vmatpush1.msra.mxu0 %v45
    %65 = vmatprep.subr.mxu0 0.0
    %66 = vmatpush1.msra.mxu0 0.0
    %67 = vmatprep.subr.mxu0 0.0
    %68 = vmatpush1.msra.mxu0 0.0
    %69 = vmatprep.subr.mxu0 0.0
    %70 = vmatpush1.msra.mxu0 0.0
    %71 = vmatprep.subr.mxu0 0.0
    %72 = vmatpush1.msra.mxu0 0.0
    %73 = vmatprep.subr.mxu0 0.0
    %74 = vmatpush1.msra.mxu0 0.0
    %75 = vmatprep.subr.mxu0 0.0
    %76 = vmatpush1.msra.mxu0 0.0
    %77 = vmatprep.subr.mxu0 0.0
    %78 = vmatpush1.msra.mxu0 0.0
    %79 = vmatprep.subr.mxu0 0.0
    %80 = vmatpush1.msra.mxu0 0.0
    %81 = vmatprep.subr.mxu0 0.0
    %82 = vmatpush1.msra.mxu0 0.0
    %83 = vmatprep.subr.mxu0 0.0
    %84 = vmatpush1.msra.mxu0 0.0
    %85 = vmatprep.subr.mxu0 0.0
    %86 = vmatpush1.msra.mxu0 0.0
    %87 = vmatprep.subr.mxu0 0.0
    %88 = vmatpush1.msra.mxu0 0.0
    %89 = vmatprep.subr.mxu0 0.0
    %90 = vmatpush1.msra.mxu0 0.0
    %91 = vmatprep.subr.mxu0 0.0
    %92 = vmatpush1.msra.mxu0 0.0
    %93 = vmatprep.subr.mxu0 0.0
    %94 = vmatpush1.msra.mxu0 0.0
    %95 = vmatprep.subr.mxu0 0.0
    %96 = vmatpush1.msra.mxu0 0.0
    %97 = vmatprep.subr.mxu0 0.0
    %98 = vmatpush1.msra.mxu0 0.0
    %99 = vmatprep.subr.mxu0 0.0
    %100 = vmatpush1.msra.mxu0 0.0
    %101 = vmatprep.subr.mxu0 0.0
    %102 = vmatpush1.msra.mxu0 0.0
    %103 = vmatprep.subr.mxu0 0.0
    %104 = vmatpush1.msra.mxu0 0.0
    %105 = vmatprep.subr.mxu0 0.0
    %106 = vmatpush1.msra.mxu0 0.0
    %107 = vmatprep.subr.mxu0 0.0
    %108 = vmatpush1.msra.mxu0 0.0
    %109 = vmatprep.subr.mxu0 0.0
    %110 = vmatpush1.msra.mxu0 0.0
    %111 = vmatprep.subr.mxu0 0.0
    %112 = vmatpush1.msra.mxu0 0.0
    %113 = vmatprep.subr.mxu0 0.0
    %114 = vmatpush1.msra.mxu0 0.0
    %115 = vmatprep.subr.mxu0 0.0
    %116 = vmatpush1.msra.mxu0 0.0
    %117 = vmatprep.subr.mxu0 0.0
    %118 = vmatpush1.msra.mxu0 0.0
    %119 = vmatprep.subr.mxu0 0.0
    %120 = vmatpush1.msra.mxu0 0.0
    %121 = vmatprep.mubr.f32.mxu0 0.0
    %122 = vmatmul.mubr.f32.gmra.mrb[0].mxu0 %v55
    %v123 = vpop.f32.mrb[0].mxu0
    %v124 = vadd.f32 %v51, %v123
    %v125 = vpop.f32.mrb[0].mxu0
    %126 = vdwg.mxu0
    %127 = vst.msk [vmem:[#allocation7] sm:$0xff] %vm53, %v124
    // Predicated region
    $region22: #{tpu_custom_call.1} parent=1 // pred_check
      _
    $region23: #{tpu_custom_call.1} parent=1 // pred_check_branch
      %129 = sbr.rel (0) target = $region25
    $region24: #{tpu_custom_call.1} parent=1 // pred_region
      %s131 = ssub.s32 128, 128
      %132 = vsyncadd [#allocation4], %s131
      %s134 = sshll.u32 [#allocation7], 4
      %s135 = int_to_ptr.vmem [resolvable:$true] %s134
      %137 = dma.vmem_to_hbm [thread:$0]  %s135, 128, %s3, [#allocation4]
    $region25: #{tpu_custom_call.1} parent=1 // pred_fallthru
      _
    // Predicated region
    $region26: #{tpu_custom_call.1} parent=1 // pred_check
      _
    $region27: #{tpu_custom_call.1} parent=1 // pred_check_branch
      %139 = sbr.rel (0) target = $region29
    $region28: #{tpu_custom_call.1} parent=1 // pred_region
      %140 = dma.done [#allocation4], 128
    $region29: #{tpu_custom_call.1} parent=1 // pred_fallthru
      _
    %141 = vsyncpa [#allocation3], 1
    %142 = vsyncpa [#allocation6], 1
    %143 = vsyncpa [#allocation4], 1

</llo_original>
